<compile_context>
chip_gen: v7x
topology: tpu7x:2x2x1
jax: 0.10.0
libtpu: 0.0.40
codegen_flags: <defaults>
</compile_context>

<pallas_src>
import jax
import jax.numpy as jnp
import numpy as np
from jax import lax
from jax.experimental import pallas as pl
from jax.experimental.pallas import tpu as pltpu

_TH_MAX = 128  # row-tile height (sublane axis); multiple of 8


def _sobel_kernel(TH, W, H):
    """Builds the kernel for one (TH, W) row tile of one batch element."""
    partial_last = (H % TH) != 0

    def kernel(img_ref, halo_ref, x_ref, mask_ref):
        # img_ref : (1, 1, TH, W)  image rows [h*TH, h*TH + TH)
        # halo_ref: (1, 1, 2, W)   row directly above / below the tile (zeros at border)
        # x_ref   : (1, 2, TH, W)  normalized (gx, gy)
        # mask_ref: (1, TH, W)     int32 edge mask
        p = img_ref[0, 0]                      # (TH, W) f32
        halo = halo_ref[0, 0]                  # (2, W)  f32

        row = lax.broadcasted_iota(jnp.int32, (TH, W), 0)
        col = lax.broadcasted_iota(jnp.int32, (TH, W), 1)

        if partial_last:
            # Rows past H in the last tile are undefined; zero them so they cannot
            # leak into the "down" neighbour of the last valid row.
            valid = H - pl.program_id(1) * TH
            p = jnp.where(row < valid, p, 0.0)

        top = jnp.broadcast_to(halo[0:1, :], (TH, W))
        bot = jnp.broadcast_to(halo[1:2, :], (TH, W))

        # Vertical neighbours: sublane rolls, boundary row patched with the halo.
        up = jnp.where(row == 0, top, pltpu.roll(p, 1, 0))               # p[i-1, j]
        down = jnp.where(row == TH - 1, bot, pltpu.roll(p, TH - 1, 0))   # p[i+1, j]

        # Separable Sobel: vertical pass ...
        v_smooth = up + 2.0 * p + down        # [1, 2, 1]^T * p
        v_diff = up - down                    # [1, 0, -1]^T * p

        # ... then horizontal combine with lane rolls (zero padding via column masks).
        def left(a):      # a[i, j-1], zero at j == 0
            return jnp.where(col == 0, 0.0, pltpu.roll(a, 1, 1))

        def right(a):     # a[i, j+1], zero at j == W-1
            return jnp.where(col == W - 1, 0.0, pltpu.roll(a, W - 1, 1))

        gx = left(v_smooth) - right(v_smooth)
        gy = left(v_diff) + 2.0 * v_diff + right(v_diff)

        norm = jnp.sqrt(gx * gx + gy * gy)
        inv = pl.reciprocal(norm + 0.001, approx=False)   # exact; shared by gx & gy
        x_ref[0, 0] = gx * inv
        x_ref[0, 1] = gy * inv
        mask_ref[0] = (norm > 0.0001).astype(jnp.int32)

    return kernel


@jax.jit
def sobel_forward(yz):
    """yz: (N, 1, H, W) float32 -> (x: (N, 2, H, W) float32, mask: (N, H, W) int32)."""
    yz = yz.astype(jnp.float32)
    N, C, H, W = yz.shape
    assert C == 1, "Sobel module uses Conv2d(1, 2, ...)"

    TH = H if H <= _TH_MAX else _TH_MAX
    nH = pl.cdiv(H, TH)

    # Tiny halo tensor: for every row tile, the image row directly above and below it
    # (zeros at the image border). ~2*nH*W floats per image -- replaces the old
    # full-image pad (a full read+write of the map) with negligible traffic.
    if nH == 1:
        halo = jnp.zeros((N, 1, 2, W), jnp.float32)
    else:
        idx = np.arange(nH)
        top_idx = np.maximum(idx * TH - 1, 0)
        bot_idx = np.minimum((idx + 1) * TH, H - 1)
        top = yz[:, 0, top_idx, :]                 # (N, nH, W)
        bot = yz[:, 0, bot_idx, :]                 # (N, nH, W)
        top = top.at[:, 0, :].set(0.0)             # above row 0 -> zero pad
        bot = bot.at[:, nH - 1, :].set(0.0)        # below row H-1 -> zero pad
        halo = jnp.stack([top, bot], axis=2)       # (N, nH, 2, W)

    out_shapes = (
        jax.ShapeDtypeStruct((N, 2, H, W), jnp.float32),
        jax.ShapeDtypeStruct((N, H, W), jnp.int32),
    )

    cost = pl.CostEstimate(
        flops=14 * N * H * W,
        transcendentals=2 * N * H * W,
        bytes_accessed=(4 + 8 + 4) * N * H * W + 8 * N * nH * W,
    )

    x, mask = pl.pallas_call(
        _sobel_kernel(TH, W, H),
        out_shape=out_shapes,
        grid_spec=pltpu.PrefetchScalarGridSpec(
            num_scalar_prefetch=0,
            grid=(N, nH),
            in_specs=[
                pl.BlockSpec((1, 1, TH, W), lambda n, h: (n, 0, h, 0)),   # image rows
                pl.BlockSpec((1, 1, 2, W), lambda n, h: (n, h, 0, 0)),    # halo rows
            ],
            out_specs=[
                pl.BlockSpec((1, 2, TH, W), lambda n, h: (n, 0, h, 0)),   # x
                pl.BlockSpec((1, TH, W), lambda n, h: (n, h, 0)),         # mask
            ],
        ),
        compiler_params=pltpu.CompilerParams(
            dimension_semantics=("parallel", "parallel"),
        ),
        cost_estimate=cost,
    )(yz, halo)
    return x, mask


def _sobel_reference(yz):
    """Pure-JAX reference mirroring the PyTorch forward (direct padded conv)."""
    N, C, H, W = yz.shape
    Gx = np.array([[1, 0, -1], [2, 0, -2], [1, 0, -1]], dtype=np.float32)
    Gy = np.array([[1, 2, 1], [0, 0, 0], [-1, -2, -1]], dtype=np.float32)
    p = jnp.pad(yz[:, 0], ((0, 0), (1, 1), (1, 1)))
    gx = jnp.zeros((N, H, W), jnp.float32)
    gy = jnp.zeros((N, H, W), jnp.float32)
    for kh in range(3):
        for kw in range(3):
            win = p[:, kh:kh + H, kw:kw + W]
            gx = gx + Gx[kh, kw] * win
            gy = gy + Gy[kh, kw] * win
    x = jnp.stack([gx, gy], axis=1)
    norm = jnp.sqrt(jnp.sum(x * x, axis=1))
    x = x / (jnp.stack([norm, norm], axis=1) + 0.001)
    return x, (norm > 0.0001).astype(jnp.int32)


if __name__ == "__main__":
    key = jax.random.PRNGKey(0)
    # Small but lane/sublane-aligned test: N=2, H=256 (two 128-row tiles -> exercises
    # the cross-tile halo path), W=128 (lane-dense, unmasked output stores).
    yz = jax.random.normal(key, (2, 1, 256, 128), dtype=jnp.float32)

    x, mask = sobel_forward(yz)
    jax.block_until_ready((x, mask))

    x_ref, mask_ref = _sobel_reference(yz)
    # Note: the kernel sums the 3x3 stencil in separable order, so gx/gy differ from
    # the reference by a few f32 ulps; dividing by (norm + 0.001) can amplify that by
    # up to 1000x at near-zero-gradient pixels, hence the modest absolute tolerance.
    np.testing.assert_allclose(np.asarray(x), np.asarray(x_ref), rtol=1e-4, atol=5e-3)
    np.testing.assert_array_equal(np.asarray(mask), np.asarray(mask_ref))

    print("KERNEL_OK")
</pallas_src>

<mosaic_0001>
module attributes {stable_mosaic.version = 11 : i64} {
  func.func @kernel(%arg0: i32, %arg1: i32, %arg2: memref<1x1x128x128xf32, #tpu.memory_space<vmem>>, %arg3: memref<1x1x2x128xf32, #tpu.memory_space<vmem>>, %arg4: memref<1x2x128x128xf32, #tpu.memory_space<vmem>>, %arg5: memref<1x128x128xi32, #tpu.memory_space<vmem>>) attributes {dimension_semantics = [#tpu.dimension_semantics<parallel>, #tpu.dimension_semantics<parallel>], iteration_bounds = array<i64: 2, 2>, scalar_prefetch = 0 : i64, scratch_operands = 0 : i64, tpu.core_type = #tpu.core_type<tc>, window_params = [{transform_indices = @transform_0, window_bounds = array<i64: 1, 1, 128, 128>}, {transform_indices = @transform_1, window_bounds = array<i64: 1, 1, 2, 128>}, {transform_indices = @transform_2, window_bounds = array<i64: 1, 2, 128, 128>}, {transform_indices = @transform_3, window_bounds = array<i64: 1, 128, 128>}]} {
    %c0 = arith.constant 0 : index
    %c0_0 = arith.constant 0 : index
    %c0_1 = arith.constant 0 : index
    %c0_2 = arith.constant 0 : index
    %0 = vector.load %arg2[%c0, %c0_0, %c0_1, %c0_2] : memref<1x1x128x128xf32, #tpu.memory_space<vmem>>, vector<1x1x128x128xf32>
    %1 = vector.shape_cast %0 : vector<1x1x128x128xf32> to vector<128x128xf32>
    %c0_3 = arith.constant 0 : index
    %c0_4 = arith.constant 0 : index
    %c0_5 = arith.constant 0 : index
    %c0_6 = arith.constant 0 : index
    %2 = vector.load %arg3[%c0_3, %c0_4, %c0_5, %c0_6] : memref<1x1x2x128xf32, #tpu.memory_space<vmem>>, vector<1x1x2x128xf32>
    %3 = vector.shape_cast %2 : vector<1x1x2x128xf32> to vector<2x128xf32>
    %4 = tpu.iota {dimensions = array<i32: 0>} : vector<128x128xi32>
    %5 = tpu.iota {dimensions = array<i32: 1>} : vector<128x128xi32>
    %6 = vector.extract_strided_slice %3 {offsets = [0, 0], sizes = [1, 128], strides = [1, 1]} : vector<2x128xf32> to vector<1x128xf32>
    %7 = vector.shape_cast %6 : vector<1x128xf32> to vector<1x128xf32>
    %8 = vector.broadcast %7 : vector<1x128xf32> to vector<128x128xf32>
    %9 = vector.extract_strided_slice %3 {offsets = [1, 0], sizes = [1, 128], strides = [1, 1]} : vector<2x128xf32> to vector<1x128xf32>
    %10 = vector.shape_cast %9 : vector<1x128xf32> to vector<1x128xf32>
    %11 = vector.broadcast %10 : vector<1x128xf32> to vector<128x128xf32>
    %c0_i32 = arith.constant 0 : i32
    %12 = vector.broadcast %c0_i32 : i32 to vector<128x128xi32>
    %13 = arith.cmpi eq, %4, %12 : vector<128x128xi32>
    %c1_i32 = arith.constant 1 : i32
    %14 = tpu.dynamic_rotate %1 by %c1_i32 dim 0 : vector<128x128xf32>, i32 -> vector<128x128xf32>
    %15 = arith.select %13, %8, %14 : vector<128x128xi1>, vector<128x128xf32>
    %c127_i32 = arith.constant 127 : i32
    %16 = vector.broadcast %c127_i32 : i32 to vector<128x128xi32>
    %17 = arith.cmpi eq, %4, %16 : vector<128x128xi32>
    %c127_i32_7 = arith.constant 127 : i32
    %18 = tpu.dynamic_rotate %1 by %c127_i32_7 dim 0 : vector<128x128xf32>, i32 -> vector<128x128xf32>
    %19 = arith.select %17, %11, %18 : vector<128x128xi1>, vector<128x128xf32>
    %cst = arith.constant 2.000000e+00 : f32
    %20 = vector.broadcast %cst : f32 to vector<128x128xf32>
    %21 = arith.mulf %20, %1 : vector<128x128xf32>
    %22 = arith.addf %15, %21 : vector<128x128xf32>
    %23 = arith.addf %22, %19 : vector<128x128xf32>
    %24 = arith.subf %15, %19 : vector<128x128xf32>
    %c0_i32_8 = arith.constant 0 : i32
    %25 = vector.broadcast %c0_i32_8 : i32 to vector<128x128xi32>
    %26 = arith.cmpi eq, %5, %25 : vector<128x128xi32>
    %c1_i32_9 = arith.constant 1 : i32
    %27 = tpu.dynamic_rotate %23 by %c1_i32_9 dim 1 : vector<128x128xf32>, i32 -> vector<128x128xf32>
    %cst_10 = arith.constant 0.000000e+00 : f32
    %28 = vector.broadcast %cst_10 : f32 to vector<128x128xf32>
    %29 = arith.select %26, %28, %27 : vector<128x128xi1>, vector<128x128xf32>
    %c127_i32_11 = arith.constant 127 : i32
    %30 = vector.broadcast %c127_i32_11 : i32 to vector<128x128xi32>
    %31 = arith.cmpi eq, %5, %30 : vector<128x128xi32>
    %c127_i32_12 = arith.constant 127 : i32
    %32 = tpu.dynamic_rotate %23 by %c127_i32_12 dim 1 : vector<128x128xf32>, i32 -> vector<128x128xf32>
    %cst_13 = arith.constant 0.000000e+00 : f32
    %33 = vector.broadcast %cst_13 : f32 to vector<128x128xf32>
    %34 = arith.select %31, %33, %32 : vector<128x128xi1>, vector<128x128xf32>
    %35 = arith.subf %29, %34 : vector<128x128xf32>
    %c0_i32_14 = arith.constant 0 : i32
    %36 = vector.broadcast %c0_i32_14 : i32 to vector<128x128xi32>
    %37 = arith.cmpi eq, %5, %36 : vector<128x128xi32>
    %c1_i32_15 = arith.constant 1 : i32
    %38 = tpu.dynamic_rotate %24 by %c1_i32_15 dim 1 : vector<128x128xf32>, i32 -> vector<128x128xf32>
    %cst_16 = arith.constant 0.000000e+00 : f32
    %39 = vector.broadcast %cst_16 : f32 to vector<128x128xf32>
    %40 = arith.select %37, %39, %38 : vector<128x128xi1>, vector<128x128xf32>
    %cst_17 = arith.constant 2.000000e+00 : f32
    %41 = vector.broadcast %cst_17 : f32 to vector<128x128xf32>
    %42 = arith.mulf %41, %24 : vector<128x128xf32>
    %43 = arith.addf %40, %42 : vector<128x128xf32>
    %c127_i32_18 = arith.constant 127 : i32
    %44 = vector.broadcast %c127_i32_18 : i32 to vector<128x128xi32>
    %45 = arith.cmpi eq, %5, %44 : vector<128x128xi32>
    %c127_i32_19 = arith.constant 127 : i32
    %46 = tpu.dynamic_rotate %24 by %c127_i32_19 dim 1 : vector<128x128xf32>, i32 -> vector<128x128xf32>
    %cst_20 = arith.constant 0.000000e+00 : f32
    %47 = vector.broadcast %cst_20 : f32 to vector<128x128xf32>
    %48 = arith.select %45, %47, %46 : vector<128x128xi1>, vector<128x128xf32>
    %49 = arith.addf %43, %48 : vector<128x128xf32>
    %50 = arith.mulf %35, %35 : vector<128x128xf32>
    %51 = arith.mulf %49, %49 : vector<128x128xf32>
    %52 = arith.addf %50, %51 : vector<128x128xf32>
    %53 = math.sqrt %52 : vector<128x128xf32>
    %cst_21 = arith.constant 1.000000e-03 : f32
    %54 = vector.broadcast %cst_21 : f32 to vector<128x128xf32>
    %55 = arith.addf %53, %54 : vector<128x128xf32>
    %56 = tpu.reciprocal %55 : vector<128x128xf32> -> vector<128x128xf32>
    %57 = arith.mulf %35, %56 : vector<128x128xf32>
    %c0_22 = arith.constant 0 : index
    %c0_23 = arith.constant 0 : index
    %c0_24 = arith.constant 0 : index
    %c0_25 = arith.constant 0 : index
    %58 = vector.load %arg4[%c0_22, %c0_23, %c0_24, %c0_25] : memref<1x2x128x128xf32, #tpu.memory_space<vmem>>, vector<1x1x128x128xf32>
    %59 = vector.shape_cast %58 : vector<1x1x128x128xf32> to vector<128x128xf32>
    %60 = vector.shape_cast %57 : vector<128x128xf32> to vector<1x1x128x128xf32>
    tpu.vector_store %arg4[%c0_22, %c0_23, %c0_24, %c0_25], %60 {strides = array<i32>} : memref<1x2x128x128xf32, #tpu.memory_space<vmem>>, vector<1x1x128x128xf32>,
    %61 = arith.mulf %49, %56 : vector<128x128xf32>
    %c0_26 = arith.constant 0 : index
    %c1 = arith.constant 1 : index
    %c0_27 = arith.constant 0 : index
    %c0_28 = arith.constant 0 : index
    %62 = vector.load %arg4[%c0_26, %c1, %c0_27, %c0_28] : memref<1x2x128x128xf32, #tpu.memory_space<vmem>>, vector<1x1x128x128xf32>
    %63 = vector.shape_cast %62 : vector<1x1x128x128xf32> to vector<128x128xf32>
    %64 = vector.shape_cast %61 : vector<128x128xf32> to vector<1x1x128x128xf32>
    tpu.vector_store %arg4[%c0_26, %c1, %c0_27, %c0_28], %64 {strides = array<i32>} : memref<1x2x128x128xf32, #tpu.memory_space<vmem>>, vector<1x1x128x128xf32>,
    %cst_29 = arith.constant 9.99999974E-5 : f32
    %65 = vector.broadcast %cst_29 : f32 to vector<128x128xf32>
    %66 = arith.cmpf ogt, %53, %65 : vector<128x128xf32>
    %67 = arith.extui %66 : vector<128x128xi1> to vector<128x128xi32>
    %c0_30 = arith.constant 0 : index
    %c0_31 = arith.constant 0 : index
    %c0_32 = arith.constant 0 : index
    %68 = vector.load %arg5[%c0_30, %c0_31, %c0_32] : memref<1x128x128xi32, #tpu.memory_space<vmem>>, vector<1x128x128xi32>
    %69 = vector.shape_cast %68 : vector<1x128x128xi32> to vector<128x128xi32>
    %70 = vector.shape_cast %67 : vector<128x128xi32> to vector<1x128x128xi32>
    tpu.vector_store %arg5[%c0_30, %c0_31, %c0_32], %70 {strides = array<i32>} : memref<1x128x128xi32, #tpu.memory_space<vmem>>, vector<1x128x128xi32>,
    return
  }
  func.func @transform_0(%arg0: i32, %arg1: i32) -> (i32, i32, i32, i32) {
    %c0_i32 = arith.constant 0 : i32
    %c0_i32_0 = arith.constant 0 : i32
    %c0_i32_1 = arith.constant 0 : i32
    return %arg0, %c0_i32, %arg1, %c0_i32_0 : i32, i32, i32, i32
  }
  func.func @transform_1(%arg0: i32, %arg1: i32) -> (i32, i32, i32, i32) {
    %c0_i32 = arith.constant 0 : i32
    %c0_i32_0 = arith.constant 0 : i32
    %c0_i32_1 = arith.constant 0 : i32
    return %arg0, %arg1, %c0_i32, %c0_i32_0 : i32, i32, i32, i32
  }
  func.func @transform_2(%arg0: i32, %arg1: i32) -> (i32, i32, i32, i32) {
    %c0_i32 = arith.constant 0 : i32
    %c0_i32_0 = arith.constant 0 : i32
    %c0_i32_1 = arith.constant 0 : i32
    return %arg0, %c0_i32, %arg1, %c0_i32_0 : i32, i32, i32, i32
  }
  func.func @transform_3(%arg0: i32, %arg1: i32) -> (i32, i32, i32) {
    %c0_i32 = arith.constant 0 : i32
    %c0_i32_0 = arith.constant 0 : i32
    return %arg0, %arg1, %c0_i32 : i32, i32, i32
  }
}

</mosaic_0001>

<llo_original>
// kernel: sobel_forward.1
$region0: #{sobel_forward.1}
  #allocation0 [shape = 'u32[]', space=smem, size = 0x4, offset = 0x4, fixed_abs, tag = 'smem constant byte address 0x4 - core index']
  #allocation1 [shape = 'u32[144,128]{1,0:T(1,128)}', space=vmem, size = 0x12000, scoped, tag = 'internal scratch']
  #allocation6 [shape = 's32[]', space=sflag, size = 0x4, offset = 0, fixed_abs, tag = 'sflag constant byte address 0x0 - dummy sync flag']
  %s0 = inlined_call_operand.vmem [shape: f32[2,1,256,128], index: 0, kind: input, shape index: {}]
  %s1 = inlined_call_operand.vmem [shape: f32[2,2,2,128], index: 1, kind: input, shape index: {}]
  %s2 = inlined_call_operand.hbm [shape: f32[2,2,256,128], index: 2, kind: output, shape index: {0}]
  %s3 = inlined_call_operand.hbm [shape: s32[2,256,128], index: 3, kind: output, shape index: {1}]
  %4 = xla_tuple %s2, %s3
  %s5 = sld [smem:[#allocation0]]
  $region49: #{sobel_forward.1} parent=0
    _
  %s7 = ssub.s32 1, %s5
  %s8 = scalar_select 0, %s7, %s5
  $region1: #{sobel_forward.1} parent=0
    #allocation2 [shape = 'u8[262144]{0}', space=vmem, size = 0x40000, scoped, tag = 'output window, operand 0']
    #allocation3 [shape = 's32[2]{0}', space=sflag, size = 0x8, scoped, tag = 'scoped memory for sobel_forward.1']
    #allocation4 [shape = 'u8[131072]{0}', space=vmem, size = 0x20000, scoped, tag = 'output window, operand 1']
    #allocation5 [shape = 's32[2]{0}', space=sflag, size = 0x8, scoped, tag = 'scoped memory for sobel_forward.1']
    %9 = vsyncpa [#allocation3], 0
    %s10 = scalar_lea.sflag [#allocation3], 1
    %11 = vsyncpa %s10, 0
    %12 = vsyncpa [#allocation5], 0
    %s13 = scalar_lea.sflag [#allocation5], 1
    %14 = vsyncpa %s13, 0
    loop: start=0, step=1, limit=6
    $region2: #{sobel_forward.1} parent=1 // loop_pre_header
      _
    $region3: #{sobel_forward.1} parent=1 // loop_header
      %s16 = sphi 0, %s20
      %p17 = scmp.ge.s32.totalorder %s16, 6
      %s23 = sphi 0, %s35
      %s24 = sphi 0, %s31
      %s25 = sphi 0, %s23
      %s26 = sphi 0, %s24
      %s27 = sphi 0, %s25
      %s28 = sphi 0, %s26
      %s40 = sphi 0, %s42
      %s43 = sphi 0, %s40
      %s44 = sphi 0, %s43
      %s60 = sphi 0, %s44
      %s68 = sphi 0, %s70
      %s71 = sphi 0, %s68
      %s72 = sphi 0, %s71
      %s88 = sphi 0, %s72
      %s96 = sphi 0, %s98
      %s99 = sphi 0, %s96
      %s100 = sphi 0, %s99
      %s116 = sphi 0, %s100
      %s124 = sphi 0, %s126
      %s127 = sphi 0, %s124
      %s128 = sphi 0, %s127
      %s144 = sphi 0, %s128
    $region4: #{sobel_forward.1} parent=1 // loop_header_branch
      %19 = sbr.rel (%p17) target = $region8
    $region5: #{sobel_forward.1} parent=1 // loop_body
      %s21 = ssub.s32 %s16, 1
      %s22 = ssub.s32 %s16, 2
      %s29 = sadd.s32 1, %s24
      %p30 = scmp.ge.s32.totalorder %s29, 2
      %s31 = scalar_select %p30, 0, %s29
      %s32 = sadd.s32 1, %s23
      %s33 = scalar_select %p30, %s32, %s23
      %p34 = scmp.ge.s32.totalorder %s33, 2
      %s35 = scalar_select %p34, 0, %s33
      %s36 = ssub.s32 %s23, %s35
      %s37 = ssub.s32 %s24, %s31
      %s38 = sor.u32 %s36, %s37
      %p39 = scmp.eq.s32.totalorder %s38, 0
      %s41 = sadd.s32 %s40, 1
      %s42 = scalar_select %p39, %s40, %s41
      %p45 = pneg %p39
      %p46 = scmp.eq.s32.totalorder %s16, 3
      %p47 = por %p45, %p46
      %p48 = scmp.ne.s32.totalorder %s40, %s43
      %p49 = scmp.eq.s32.totalorder %s16, 0
      %p50 = por %p48, %p49
      %p51 = scmp.ne.s32.totalorder %s40, %s43
      %p52 = scmp.eq.s32.totalorder %s21, 3
      %p53 = por %p51, %p52
      %p54 = scmp.ne.s32.totalorder %s43, %s44
      %p55 = scmp.eq.s32.totalorder %s21, 0
      %p56 = por %p54, %p55
      %p57 = scmp.ne.s32.totalorder %s43, %s44
      %p58 = scmp.eq.s32.totalorder %s22, 3
      %p59 = por %p57, %p58
      %p61 = scmp.ne.s32.totalorder %s44, %s60
      %p62 = scmp.eq.s32.totalorder %s22, 0
      %p63 = por %p61, %p62
      %s64 = ssub.s32 %s23, %s35
      %s65 = ssub.s32 %s24, %s31
      %s66 = sor.u32 %s64, %s65
      %p67 = scmp.eq.s32.totalorder %s66, 0
      %s69 = sadd.s32 %s68, 1
      %s70 = scalar_select %p67, %s68, %s69
      %p73 = pneg %p67
      %p74 = scmp.eq.s32.totalorder %s16, 3
      %p75 = por %p73, %p74
      %p76 = scmp.ne.s32.totalorder %s68, %s71
      %p77 = scmp.eq.s32.totalorder %s16, 0
      %p78 = por %p76, %p77
      %p79 = scmp.ne.s32.totalorder %s68, %s71
      %p80 = scmp.eq.s32.totalorder %s21, 3
      %p81 = por %p79, %p80
      %p82 = scmp.ne.s32.totalorder %s71, %s72
      %p83 = scmp.eq.s32.totalorder %s21, 0
      %p84 = por %p82, %p83
      %p85 = scmp.ne.s32.totalorder %s71, %s72
      %p86 = scmp.eq.s32.totalorder %s22, 3
      %p87 = por %p85, %p86
      %p89 = scmp.ne.s32.totalorder %s72, %s88
      %p90 = scmp.eq.s32.totalorder %s22, 0
      %p91 = por %p89, %p90
      %s92 = ssub.s32 %s23, %s35
      %s93 = ssub.s32 %s24, %s31
      %s94 = sor.u32 %s92, %s93
      %p95 = scmp.eq.s32.totalorder %s94, 0
      %s97 = sadd.s32 %s96, 1
      %s98 = scalar_select %p95, %s96, %s97
      %p101 = pneg %p95
      %p102 = scmp.eq.s32.totalorder %s16, 3
      %p103 = por %p101, %p102
      %p104 = scmp.ne.s32.totalorder %s96, %s99
      %p105 = scmp.eq.s32.totalorder %s16, 0
      %p106 = por %p104, %p105
      %p107 = scmp.ne.s32.totalorder %s96, %s99
      %p108 = scmp.eq.s32.totalorder %s21, 3
      %p109 = por %p107, %p108
      %p110 = scmp.ne.s32.totalorder %s99, %s100
      %p111 = scmp.eq.s32.totalorder %s21, 0
      %p112 = por %p110, %p111
      %p113 = scmp.ne.s32.totalorder %s99, %s100
      %p114 = scmp.eq.s32.totalorder %s22, 3
      %p115 = por %p113, %p114
      %p117 = scmp.ne.s32.totalorder %s100, %s116
      %p118 = scmp.eq.s32.totalorder %s22, 0
      %p119 = por %p117, %p118
      %s120 = ssub.s32 %s23, %s35
      %s121 = ssub.s32 %s24, %s31
      %s122 = sor.u32 %s120, %s121
      %p123 = scmp.eq.s32.totalorder %s122, 0
      %s125 = sadd.s32 %s124, 1
      %s126 = scalar_select %p123, %s124, %s125
      %p129 = pneg %p123
      %p130 = scmp.eq.s32.totalorder %s16, 3
      %p131 = por %p129, %p130
      %p132 = scmp.ne.s32.totalorder %s124, %s127
      %p133 = scmp.eq.s32.totalorder %s16, 0
      %p134 = por %p132, %p133
      %p135 = scmp.ne.s32.totalorder %s124, %s127
      %p136 = scmp.eq.s32.totalorder %s21, 3
      %p137 = por %p135, %p136
      %p138 = scmp.ne.s32.totalorder %s127, %s128
      %p139 = scmp.eq.s32.totalorder %s21, 0
      %p140 = por %p138, %p139
      %p141 = scmp.ne.s32.totalorder %s127, %s128
      %p142 = scmp.eq.s32.totalorder %s22, 3
      %p143 = por %p141, %p142
      %p145 = scmp.ne.s32.totalorder %s128, %s144
      %p146 = scmp.eq.s32.totalorder %s22, 0
      %p147 = por %p145, %p146
      %p148 = scmp.le.s32.totalorder 1, %s16
      %p149 = scmp.lt.s32.totalorder %s16, 5
      %p150 = pnand %p148, %p149
      %p151 = pneg %p150
      // Predicated region
      $region9: #{sobel_forward.1} parent=5 // pred_check
        _
      $region10: #{sobel_forward.1} parent=5 // pred_check_branch
        %153 = sbr.rel (%p150) target = $region12
      $region11: #{sobel_forward.1} parent=5 // pred_region
        %s154 = ssub.s32 %s16, 1
      $region12: #{sobel_forward.1} parent=5 // pred_fallthru
        _
      %p155 = scmp.lt.s32.totalorder %s16, 4
      // Predicated region
      $region13: #{sobel_forward.1} parent=5 // pred_check
        %p156 = pneg %p155
      $region14: #{sobel_forward.1} parent=5 // pred_check_branch
        %158 = sbr.rel (%p156) target = $region16
      $region15: #{sobel_forward.1} parent=5 // pred_region
        // Predicated region
        $region17: #{sobel_forward.1} parent=15 // pred_check
          %p159 = pneg %p50
        $region18: #{sobel_forward.1} parent=15 // pred_check_branch
          %161 = sbr.rel (%p159) target = $region20
        $region19: #{sobel_forward.1} parent=15 // pred_region
          %s162 = smul.u32 16, %s24
          %p163 = scmp.lt.s32.totalorder %s23, 1
          %s164 = scalar_select %p163, %s23, 1
          %p165 = scmp.lt.s32.totalorder %s162, 31
          %s166 = scalar_select %p165, %s162, 31
          %s167 = smul.addr %s164, 32
          %s168 = sadd.s32 %s166, %s167
          %s169 = smul.addr %s168, 8
          %s170 = scalar_lea.vmem %s0, %s169
          %s171 = smul.u32 16, %s24
        $region20: #{sobel_forward.1} parent=15 // pred_fallthru
          _
        // Predicated region
        $region21: #{sobel_forward.1} parent=15 // pred_check
          %p172 = pneg %p78
        $region22: #{sobel_forward.1} parent=15 // pred_check_branch
          %174 = sbr.rel (%p172) target = $region24
        $region23: #{sobel_forward.1} parent=15 // pred_region
          %p175 = scmp.lt.s32.totalorder %s23, 1
          %s176 = scalar_select %p175, %s23, 1
          %p177 = scmp.lt.s32.totalorder %s24, 1
          %s178 = scalar_select %p177, %s24, 1
          %s179 = smul.addr %s176, 2
          %s180 = sadd.s32 %s178, %s179
          %s181 = smul.addr %s180, 2
          %s182 = scalar_lea.vmem %s1, %s181
        $region24: #{sobel_forward.1} parent=15 // pred_fallthru
          _
      $region16: #{sobel_forward.1} parent=5 // pred_fallthru
        _
      %p183 = scmp.le.s32.totalorder 1, %s16
      %p184 = scmp.lt.s32.totalorder %s16, 5
      %p185 = pnand %p183, %p184
      %p186 = pneg %p185
      // Predicated region
      $region25: #{sobel_forward.1} parent=5 // pred_check
        _
      $region26: #{sobel_forward.1} parent=5 // pred_check_branch
        %188 = sbr.rel (%p185) target = $region28
      $region27: #{sobel_forward.1} parent=5 // pred_region
        %s189 = ssub.s32 %s16, 1
        %s190 = smul.u32 16, %s26
        %p191 = scmp.lt.s32.totalorder %s25, 1
        %s192 = scalar_select %p191, %s25, 1
        %p193 = scmp.lt.s32.totalorder %s190, 31
        %s194 = scalar_select %p193, %s190, 31
        %s195 = smul.addr %s192, 32
        %s196 = sadd.s32 %s194, %s195
        %s197 = smul.addr %s196, 8
        %s198 = scalar_lea.vmem %s0, %s197
        %p199 = pneg %p56
        %p200 = pneg %p53
        %p201 = scmp.lt.s32.totalorder %s25, 1
        %s202 = scalar_select %p201, %s25, 1
        %p203 = scmp.lt.s32.totalorder %s26, 1
        %s204 = scalar_select %p203, %s26, 1
        %s205 = smul.addr %s202, 2
        %s206 = sadd.s32 %s204, %s205
        %s207 = smul.addr %s206, 2
        %s208 = scalar_lea.vmem %s1, %s207
        %p209 = pneg %p84
        %p210 = pneg %p81
        %p211 = pneg %p112
        %p212 = pneg %p109
        %s213 = sand.u32 %s99, 1
        %s214 = scalar_lea.sflag [#allocation3], %s213
        %s215 = sand.u32 %s99, 1
        %s216 = smul.addr %s215, 256
        %s217 = scalar_lea.vmem [#allocation2], %s216
        %p218 = pneg %p140
        %p219 = pneg %p137
        %s220 = sand.u32 %s127, 1
        %s221 = scalar_lea.sflag [#allocation5], %s220
        %s222 = sand.u32 %s127, 1
        %s223 = smul.addr %s222, 128
        %s224 = scalar_lea.vmem [#allocation4], %s223
        %s225 = smul.u32 16, %s26
        %p226 = scmp.lt.s32.totalorder %s25, 1
        %s227 = scalar_select %p226, %s25, 1
        %p228 = scmp.lt.s32.totalorder %s225, 31
        %s229 = scalar_select %p228, %s225, 31
        %s230 = smul.addr %s227, 32
        %s231 = sadd.s32 %s229, %s230
        %s232 = smul.addr %s231, 8
        %s233 = scalar_lea.vmem %s0, %s232
        %s234 = smul.u32 16, %s26
        %p235 = scmp.lt.s32.totalorder %s25, 1
        %s236 = scalar_select %p235, %s25, 1
        %p237 = scmp.lt.s32.totalorder %s26, 1
        %s238 = scalar_select %p237, %s26, 1
        %s239 = smul.addr %s236, 2
        %s240 = sadd.s32 %s238, %s239
        %s241 = smul.addr %s240, 2
        %s242 = scalar_lea.vmem %s1, %s241
        %s243 = smul.u32 16, %s26
        %s244 = smul.u32 16, %s26
        %v245 = vld [vmem:[%s233] sm:$0xff]
        %v246 = vld [vmem:[%s233 + $0x8] sm:$0xff]
        %v247 = vld [vmem:[%s233 + $0x10] sm:$0xff]
        %v248 = vld [vmem:[%s233 + $0x18] sm:$0xff]
        %v249 = vld [vmem:[%s233 + $0x20] sm:$0xff]
        %v250 = vld [vmem:[%s233 + $0x28] sm:$0xff]
        %v251 = vld [vmem:[%s233 + $0x30] sm:$0xff]
        %v252 = vld [vmem:[%s233 + $0x38] sm:$0xff]
        %v253 = vld [vmem:[%s233 + $0x40] sm:$0xff]
        %v254 = vld [vmem:[%s233 + $0x48] sm:$0xff]
        %v255 = vld [vmem:[%s233 + $0x50] sm:$0xff]
        %v256 = vld [vmem:[%s233 + $0x58] sm:$0xff]
        %v257 = vld [vmem:[%s233 + $0x60] sm:$0xff]
        %v258 = vld [vmem:[%s233 + $0x68] sm:$0xff]
        %v259 = vld [vmem:[%s233 + $0x70] sm:$0xff]
        %v260 = vld [vmem:[%s233 + $0x78] sm:$0xff]
        %v261 = vld [vmem:[%s242] sm:$0x3]
        %v262 = vlaneseq
        %v263 = vshrl.u32 %v262, 7
        %v264 = vadd.s32 %v263, 8
        %v265 = vadd.s32 %v263, 16
        %v266 = vadd.s32 %v263, 24
        %v267 = vadd.s32 %v263, 32
        %v268 = vadd.s32 %v263, 40
        %v269 = vadd.s32 %v263, 48
        %v270 = vadd.s32 %v263, 56
        %v271 = vadd.s32 %v263, 64
        %v272 = vadd.s32 %v263, 72
        %v273 = vadd.s32 %v263, 80
        %v274 = vadd.s32 %v263, 88
        %v275 = vadd.s32 %v263, 96
        %v276 = vadd.s32 %v263, 104
        %v277 = vadd.s32 %v263, 112
        %v278 = vadd.s32 %v263, 120
        %v279 = vlaneseq
        %v280 = vand.u32 %v279, 127
        %v281 = vlaneseq
        %v282 = vshrl.u32 %v281, 7
        %v283 = vsub.s32 0, %v282
        %v284 = vrot.slane %v261, %v283
        %v285 = vlaneseq
        %v286 = vshrl.u32 %v285, 7
        %v287 = vsub.s32 1, %v286
        %v288 = vrot.slane %v261, %v287
        %vm289 = vcmp.eq.s32.totalorder %v263, 0
        %vm290 = vcmp.eq.s32.totalorder %v264, 0
        %vm291 = vcmp.eq.s32.totalorder %v265, 0
        %vm292 = vcmp.eq.s32.totalorder %v266, 0
        %vm293 = vcmp.eq.s32.totalorder %v267, 0
        %vm294 = vcmp.eq.s32.totalorder %v268, 0
        %vm295 = vcmp.eq.s32.totalorder %v269, 0
        %vm296 = vcmp.eq.s32.totalorder %v270, 0
        %vm297 = vcmp.eq.s32.totalorder %v271, 0
        %vm298 = vcmp.eq.s32.totalorder %v272, 0
        %vm299 = vcmp.eq.s32.totalorder %v273, 0
        %vm300 = vcmp.eq.s32.totalorder %v274, 0
        %vm301 = vcmp.eq.s32.totalorder %v275, 0
        %vm302 = vcmp.eq.s32.totalorder %v276, 0
        %vm303 = vcmp.eq.s32.totalorder %v277, 0
        %vm304 = vcmp.eq.s32.totalorder %v278, 0
        %v305 = vrot.slane %v245, 7
        %v306 = vrot.slane %v246, 7
        %v307 = vrot.slane %v247, 7
        %v308 = vrot.slane %v248, 7
        %v309 = vrot.slane %v249, 7
        %v310 = vrot.slane %v250, 7
        %v311 = vrot.slane %v251, 7
        %v312 = vrot.slane %v252, 7
        %v313 = vrot.slane %v253, 7
        %v314 = vrot.slane %v254, 7
        %v315 = vrot.slane %v255, 7
        %v316 = vrot.slane %v256, 7
        %v317 = vrot.slane %v257, 7
        %v318 = vrot.slane %v258, 7
        %v319 = vrot.slane %v259, 7
        %v320 = vrot.slane %v260, 7
        %vm321 = vcmp.lt.s32.totalorder %v263, 1
        %v322 = vsel %vm321, %v319, %v320
        %v323 = vsel %vm321, %v318, %v319
        %v324 = vsel %vm321, %v317, %v318
        %v325 = vsel %vm321, %v316, %v317
        %v326 = vsel %vm321, %v315, %v316
        %v327 = vsel %vm321, %v314, %v315
        %v328 = vsel %vm321, %v313, %v314
        %v329 = vsel %vm321, %v312, %v313
        %v330 = vsel %vm321, %v311, %v312
        %v331 = vsel %vm321, %v310, %v311
        %v332 = vsel %vm321, %v309, %v310
        %v333 = vsel %vm321, %v308, %v309
        %v334 = vsel %vm321, %v307, %v308
        %v335 = vsel %vm321, %v306, %v307
        %v336 = vsel %vm321, %v305, %v306
        %v337 = vsel %vm321, %v320, %v305
        %v338 = vsel %vm289, %v284, %v337
        %v339 = vsel %vm290, %v284, %v336
        %v340 = vsel %vm291, %v284, %v335
        %v341 = vsel %vm292, %v284, %v334
        %v342 = vsel %vm293, %v284, %v333
        %v343 = vsel %vm294, %v284, %v332
        %v344 = vsel %vm295, %v284, %v331
        %v345 = vsel %vm296, %v284, %v330
        %v346 = vsel %vm297, %v284, %v329
        %v347 = vsel %vm298, %v284, %v328
        %v348 = vsel %vm299, %v284, %v327
        %v349 = vsel %vm300, %v284, %v326
        %v350 = vsel %vm301, %v284, %v325
        %v351 = vsel %vm302, %v284, %v324
        %v352 = vsel %vm303, %v284, %v323
        %v353 = vsel %vm304, %v284, %v322
        %vm354 = vcmp.eq.s32.totalorder %v263, 127
        %vm355 = vcmp.eq.s32.totalorder %v264, 127
        %vm356 = vcmp.eq.s32.totalorder %v265, 127
        %vm357 = vcmp.eq.s32.totalorder %v266, 127
        %vm358 = vcmp.eq.s32.totalorder %v267, 127
        %vm359 = vcmp.eq.s32.totalorder %v268, 127
        %vm360 = vcmp.eq.s32.totalorder %v269, 127
        %vm361 = vcmp.eq.s32.totalorder %v270, 127
        %vm362 = vcmp.eq.s32.totalorder %v271, 127
        %vm363 = vcmp.eq.s32.totalorder %v272, 127
        %vm364 = vcmp.eq.s32.totalorder %v273, 127
        %vm365 = vcmp.eq.s32.totalorder %v274, 127
        %vm366 = vcmp.eq.s32.totalorder %v275, 127
        %vm367 = vcmp.eq.s32.totalorder %v276, 127
        %vm368 = vcmp.eq.s32.totalorder %v277, 127
        %vm369 = vcmp.eq.s32.totalorder %v278, 127
        %v370 = vrot.slane %v245, 1
        %v371 = vrot.slane %v246, 1
        %v372 = vrot.slane %v247, 1
        %v373 = vrot.slane %v248, 1
        %v374 = vrot.slane %v249, 1
        %v375 = vrot.slane %v250, 1
        %v376 = vrot.slane %v251, 1
        %v377 = vrot.slane %v252, 1
        %v378 = vrot.slane %v253, 1
        %v379 = vrot.slane %v254, 1
        %v380 = vrot.slane %v255, 1
        %v381 = vrot.slane %v256, 1
        %v382 = vrot.slane %v257, 1
        %v383 = vrot.slane %v258, 1
        %v384 = vrot.slane %v259, 1
        %v385 = vrot.slane %v260, 1
        %vm386 = vcmp.lt.s32.totalorder %v263, 7
        %v387 = vsel %vm386, %v384, %v385
        %v388 = vsel %vm386, %v383, %v384
        %v389 = vsel %vm386, %v382, %v383
        %v390 = vsel %vm386, %v381, %v382
        %v391 = vsel %vm386, %v380, %v381
        %v392 = vsel %vm386, %v379, %v380
        %v393 = vsel %vm386, %v378, %v379
        %v394 = vsel %vm386, %v377, %v378
        %v395 = vsel %vm386, %v376, %v377
        %v396 = vsel %vm386, %v375, %v376
        %v397 = vsel %vm386, %v374, %v375
        %v398 = vsel %vm386, %v373, %v374
        %v399 = vsel %vm386, %v372, %v373
        %v400 = vsel %vm386, %v371, %v372
        %v401 = vsel %vm386, %v370, %v371
        %v402 = vsel %vm386, %v385, %v370
        %v403 = vsel %vm354, %v288, %v401
        %v404 = vsel %vm355, %v288, %v400
        %v405 = vsel %vm356, %v288, %v399
        %v406 = vsel %vm357, %v288, %v398
        %v407 = vsel %vm358, %v288, %v397
        %v408 = vsel %vm359, %v288, %v396
        %v409 = vsel %vm360, %v288, %v395
        %v410 = vsel %vm361, %v288, %v394
        %v411 = vsel %vm362, %v288, %v393
        %v412 = vsel %vm363, %v288, %v392
        %v413 = vsel %vm364, %v288, %v391
        %v414 = vsel %vm365, %v288, %v390
        %v415 = vsel %vm366, %v288, %v389
        %v416 = vsel %vm367, %v288, %v388
        %v417 = vsel %vm368, %v288, %v387
        %v418 = vsel %vm369, %v288, %v402
        %v419 = vmul.f32 %v245, 2.0
        %v420 = vmul.f32 %v246, 2.0
        %v421 = vmul.f32 %v247, 2.0
        %v422 = vmul.f32 %v248, 2.0
        %v423 = vmul.f32 %v249, 2.0
        %v424 = vmul.f32 %v250, 2.0
        %v425 = vmul.f32 %v251, 2.0
        %v426 = vmul.f32 %v252, 2.0
        %v427 = vmul.f32 %v253, 2.0
        %v428 = vmul.f32 %v254, 2.0
        %v429 = vmul.f32 %v255, 2.0
        %v430 = vmul.f32 %v256, 2.0
        %v431 = vmul.f32 %v257, 2.0
        %v432 = vmul.f32 %v258, 2.0
        %v433 = vmul.f32 %v259, 2.0
        %v434 = vmul.f32 %v260, 2.0
        %v435 = vadd.f32 %v338, %v419
        %v436 = vadd.f32 %v339, %v420
        %v437 = vadd.f32 %v340, %v421
        %v438 = vadd.f32 %v341, %v422
        %v439 = vadd.f32 %v342, %v423
        %v440 = vadd.f32 %v343, %v424
        %v441 = vadd.f32 %v344, %v425
        %v442 = vadd.f32 %v345, %v426
        %v443 = vadd.f32 %v346, %v427
        %v444 = vadd.f32 %v347, %v428
        %v445 = vadd.f32 %v348, %v429
        %v446 = vadd.f32 %v349, %v430
        %v447 = vadd.f32 %v350, %v431
        %v448 = vadd.f32 %v351, %v432
        %v449 = vadd.f32 %v352, %v433
        %v450 = vadd.f32 %v353, %v434
        %v451 = vadd.f32 %v435, %v403
        %v452 = vadd.f32 %v436, %v404
        %v453 = vadd.f32 %v437, %v405
        %v454 = vadd.f32 %v438, %v406
        %v455 = vadd.f32 %v439, %v407
        %v456 = vadd.f32 %v440, %v408
        %v457 = vadd.f32 %v441, %v409
        %v458 = vadd.f32 %v442, %v410
        %v459 = vadd.f32 %v443, %v411
        %v460 = vadd.f32 %v444, %v412
        %v461 = vadd.f32 %v445, %v413
        %v462 = vadd.f32 %v446, %v414
        %v463 = vadd.f32 %v447, %v415
        %v464 = vadd.f32 %v448, %v416
        %v465 = vadd.f32 %v449, %v417
        %v466 = vadd.f32 %v450, %v418
        %v467 = vsub.f32 %v338, %v403
        %v468 = vsub.f32 %v339, %v404
        %v469 = vsub.f32 %v340, %v405
        %v470 = vsub.f32 %v341, %v406
        %v471 = vsub.f32 %v342, %v407
        %v472 = vsub.f32 %v343, %v408
        %v473 = vsub.f32 %v344, %v409
        %v474 = vsub.f32 %v345, %v410
        %v475 = vsub.f32 %v346, %v411
        %v476 = vsub.f32 %v347, %v412
        %v477 = vsub.f32 %v348, %v413
        %v478 = vsub.f32 %v349, %v414
        %v479 = vsub.f32 %v350, %v415
        %v480 = vsub.f32 %v351, %v416
        %v481 = vsub.f32 %v352, %v417
        %v482 = vsub.f32 %v353, %v418
        %vm483 = vcmp.eq.s32.totalorder %v280, 0
        %484 = vrot.lane.b32.xlu0 %v451, 1
        %v485 = vpop.permute.xlu0 %484
        %486 = vrot.lane.b32.xlu0 %v452, 1
        %v487 = vpop.permute.xlu0 %486
        %488 = vrot.lane.b32.xlu0 %v453, 1
        %v489 = vpop.permute.xlu0 %488
        %490 = vrot.lane.b32.xlu0 %v454, 1
        %v491 = vpop.permute.xlu0 %490
        %492 = vrot.lane.b32.xlu0 %v455, 1
        %v493 = vpop.permute.xlu0 %492
        %494 = vrot.lane.b32.xlu0 %v456, 1
        %v495 = vpop.permute.xlu0 %494
        %496 = vrot.lane.b32.xlu0 %v457, 1
        %v497 = vpop.permute.xlu0 %496
        %498 = vrot.lane.b32.xlu0 %v458, 1
        %v499 = vpop.permute.xlu0 %498
        %500 = vrot.lane.b32.xlu0 %v459, 1
        %v501 = vpop.permute.xlu0 %500
        %502 = vrot.lane.b32.xlu0 %v460, 1
        %v503 = vpop.permute.xlu0 %502
        %504 = vrot.lane.b32.xlu0 %v461, 1
        %v505 = vpop.permute.xlu0 %504
        %506 = vrot.lane.b32.xlu0 %v462, 1
        %v507 = vpop.permute.xlu0 %506
        %508 = vrot.lane.b32.xlu0 %v463, 1
        %v509 = vpop.permute.xlu0 %508
        %510 = vrot.lane.b32.xlu0 %v464, 1
        %v511 = vpop.permute.xlu0 %510
        %512 = vrot.lane.b32.xlu0 %v465, 1
        %v513 = vpop.permute.xlu0 %512
        %514 = vrot.lane.b32.xlu0 %v466, 1
        %v515 = vpop.permute.xlu0 %514
        %v516 = vsel %vm483, 0.0, %v485
        %v517 = vsel %vm483, 0.0, %v487
        %v518 = vsel %vm483, 0.0, %v489
        %v519 = vsel %vm483, 0.0, %v491
        %v520 = vsel %vm483, 0.0, %v493
        %v521 = vsel %vm483, 0.0, %v495
        %v522 = vsel %vm483, 0.0, %v497
        %v523 = vsel %vm483, 0.0, %v499
        %v524 = vsel %vm483, 0.0, %v501
        %v525 = vsel %vm483, 0.0, %v503
        %v526 = vsel %vm483, 0.0, %v505
        %v527 = vsel %vm483, 0.0, %v507
        %v528 = vsel %vm483, 0.0, %v509
        %v529 = vsel %vm483, 0.0, %v511
        %v530 = vsel %vm483, 0.0, %v513
        %v531 = vsel %vm483, 0.0, %v515
        %vm532 = vcmp.eq.s32.totalorder %v280, 127
        %533 = vrot.lane.b32.xlu0 %v451, 127
        %v534 = vpop.permute.xlu0 %533
        %535 = vrot.lane.b32.xlu0 %v452, 127
        %v536 = vpop.permute.xlu0 %535
        %537 = vrot.lane.b32.xlu0 %v453, 127
        %v538 = vpop.permute.xlu0 %537
        %539 = vrot.lane.b32.xlu0 %v454, 127
        %v540 = vpop.permute.xlu0 %539
        %541 = vrot.lane.b32.xlu0 %v455, 127
        %v542 = vpop.permute.xlu0 %541
        %543 = vrot.lane.b32.xlu0 %v456, 127
        %v544 = vpop.permute.xlu0 %543
        %545 = vrot.lane.b32.xlu0 %v457, 127
        %v546 = vpop.permute.xlu0 %545
        %547 = vrot.lane.b32.xlu0 %v458, 127
        %v548 = vpop.permute.xlu0 %547
        %549 = vrot.lane.b32.xlu0 %v459, 127
        %v550 = vpop.permute.xlu0 %549
        %551 = vrot.lane.b32.xlu0 %v460, 127
        %v552 = vpop.permute.xlu0 %551
        %553 = vrot.lane.b32.xlu0 %v461, 127
        %v554 = vpop.permute.xlu0 %553
        %555 = vrot.lane.b32.xlu0 %v462, 127
        %v556 = vpop.permute.xlu0 %555
        %557 = vrot.lane.b32.xlu0 %v463, 127
        %v558 = vpop.permute.xlu0 %557
        %559 = vrot.lane.b32.xlu0 %v464, 127
        %v560 = vpop.permute.xlu0 %559
        %561 = vrot.lane.b32.xlu0 %v465, 127
        %v562 = vpop.permute.xlu0 %561
        %563 = vrot.lane.b32.xlu0 %v466, 127
        %v564 = vpop.permute.xlu0 %563
        %v565 = vsel %vm532, 0.0, %v534
        %v566 = vsel %vm532, 0.0, %v536
        %v567 = vsel %vm532, 0.0, %v538
        %v568 = vsel %vm532, 0.0, %v540
        %v569 = vsel %vm532, 0.0, %v542
        %v570 = vsel %vm532, 0.0, %v544
        %v571 = vsel %vm532, 0.0, %v546
        %v572 = vsel %vm532, 0.0, %v548
        %v573 = vsel %vm532, 0.0, %v550
        %v574 = vsel %vm532, 0.0, %v552
        %v575 = vsel %vm532, 0.0, %v554
        %v576 = vsel %vm532, 0.0, %v556
        %v577 = vsel %vm532, 0.0, %v558
        %v578 = vsel %vm532, 0.0, %v560
        %v579 = vsel %vm532, 0.0, %v562
        %v580 = vsel %vm532, 0.0, %v564
        %v581 = vsub.f32 %v516, %v565
        %v582 = vsub.f32 %v517, %v566
        %v583 = vsub.f32 %v518, %v567
        %v584 = vsub.f32 %v519, %v568
        %v585 = vsub.f32 %v520, %v569
        %v586 = vsub.f32 %v521, %v570
        %v587 = vsub.f32 %v522, %v571
        %v588 = vsub.f32 %v523, %v572
        %v589 = vsub.f32 %v524, %v573
        %v590 = vsub.f32 %v525, %v574
        %v591 = vsub.f32 %v526, %v575
        %v592 = vsub.f32 %v527, %v576
        %v593 = vsub.f32 %v528, %v577
        %v594 = vsub.f32 %v529, %v578
        %v595 = vsub.f32 %v530, %v579
        %v596 = vsub.f32 %v531, %v580
        %597 = vrot.lane.b32.xlu0 %v467, 1
        %v598 = vpop.permute.xlu0 %597
        %599 = vrot.lane.b32.xlu0 %v468, 1
        %v600 = vpop.permute.xlu0 %599
        %601 = vrot.lane.b32.xlu0 %v469, 1
        %v602 = vpop.permute.xlu0 %601
        %603 = vrot.lane.b32.xlu0 %v470, 1
        %v604 = vpop.permute.xlu0 %603
        %605 = vrot.lane.b32.xlu0 %v471, 1
        %v606 = vpop.permute.xlu0 %605
        %607 = vrot.lane.b32.xlu0 %v472, 1
        %v608 = vpop.permute.xlu0 %607
        %609 = vrot.lane.b32.xlu0 %v473, 1
        %v610 = vpop.permute.xlu0 %609
        %611 = vrot.lane.b32.xlu0 %v474, 1
        %v612 = vpop.permute.xlu0 %611
        %613 = vrot.lane.b32.xlu0 %v475, 1
        %v614 = vpop.permute.xlu0 %613
        %615 = vrot.lane.b32.xlu0 %v476, 1
        %v616 = vpop.permute.xlu0 %615
        %617 = vrot.lane.b32.xlu0 %v477, 1
        %v618 = vpop.permute.xlu0 %617
        %619 = vrot.lane.b32.xlu0 %v478, 1
        %v620 = vpop.permute.xlu0 %619
        %621 = vrot.lane.b32.xlu0 %v479, 1
        %v622 = vpop.permute.xlu0 %621
        %623 = vrot.lane.b32.xlu0 %v480, 1
        %v624 = vpop.permute.xlu0 %623
        %625 = vrot.lane.b32.xlu0 %v481, 1
        %v626 = vpop.permute.xlu0 %625
        %627 = vrot.lane.b32.xlu0 %v482, 1
        %v628 = vpop.permute.xlu0 %627
        %v629 = vsel %vm483, 0.0, %v598
        %v630 = vsel %vm483, 0.0, %v600
        %v631 = vsel %vm483, 0.0, %v602
        %v632 = vsel %vm483, 0.0, %v604
        %v633 = vsel %vm483, 0.0, %v606
        %v634 = vsel %vm483, 0.0, %v608
        %v635 = vsel %vm483, 0.0, %v610
        %v636 = vsel %vm483, 0.0, %v612
        %v637 = vsel %vm483, 0.0, %v614
        %v638 = vsel %vm483, 0.0, %v616
        %v639 = vsel %vm483, 0.0, %v618
        %v640 = vsel %vm483, 0.0, %v620
        %v641 = vsel %vm483, 0.0, %v622
        %v642 = vsel %vm483, 0.0, %v624
        %v643 = vsel %vm483, 0.0, %v626
        %v644 = vsel %vm483, 0.0, %v628
        %v645 = vmul.f32 %v467, 2.0
        %v646 = vmul.f32 %v468, 2.0
        %v647 = vmul.f32 %v469, 2.0
        %v648 = vmul.f32 %v470, 2.0
        %v649 = vmul.f32 %v471, 2.0
        %v650 = vmul.f32 %v472, 2.0
        %v651 = vmul.f32 %v473, 2.0
        %v652 = vmul.f32 %v474, 2.0
        %v653 = vmul.f32 %v475, 2.0
        %v654 = vmul.f32 %v476, 2.0
        %v655 = vmul.f32 %v477, 2.0
        %v656 = vmul.f32 %v478, 2.0
        %v657 = vmul.f32 %v479, 2.0
        %v658 = vmul.f32 %v480, 2.0
        %v659 = vmul.f32 %v481, 2.0
        %v660 = vmul.f32 %v482, 2.0
        %v661 = vadd.f32 %v629, %v645
        %v662 = vadd.f32 %v630, %v646
        %v663 = vadd.f32 %v631, %v647
        %v664 = vadd.f32 %v632, %v648
        %v665 = vadd.f32 %v633, %v649
        %v666 = vadd.f32 %v634, %v650
        %v667 = vadd.f32 %v635, %v651
        %v668 = vadd.f32 %v636, %v652
        %v669 = vadd.f32 %v637, %v653
        %v670 = vadd.f32 %v638, %v654
        %v671 = vadd.f32 %v639, %v655
        %v672 = vadd.f32 %v640, %v656
        %v673 = vadd.f32 %v641, %v657
        %v674 = vadd.f32 %v642, %v658
        %v675 = vadd.f32 %v643, %v659
        %v676 = vadd.f32 %v644, %v660
        %677 = vrot.lane.b32.xlu0 %v467, 127
        %v678 = vpop.permute.xlu0 %677
        %679 = vrot.lane.b32.xlu0 %v468, 127
        %v680 = vpop.permute.xlu0 %679
        %681 = vrot.lane.b32.xlu0 %v469, 127
        %v682 = vpop.permute.xlu0 %681
        %683 = vrot.lane.b32.xlu0 %v470, 127
        %v684 = vpop.permute.xlu0 %683
        %685 = vrot.lane.b32.xlu0 %v471, 127
        %v686 = vpop.permute.xlu0 %685
        %687 = vrot.lane.b32.xlu0 %v472, 127
        %v688 = vpop.permute.xlu0 %687
        %689 = vrot.lane.b32.xlu0 %v473, 127
        %v690 = vpop.permute.xlu0 %689
        %691 = vrot.lane.b32.xlu0 %v474, 127
        %v692 = vpop.permute.xlu0 %691
        %693 = vrot.lane.b32.xlu0 %v475, 127
        %v694 = vpop.permute.xlu0 %693
        %695 = vrot.lane.b32.xlu0 %v476, 127
        %v696 = vpop.permute.xlu0 %695
        %697 = vrot.lane.b32.xlu0 %v477, 127
        %v698 = vpop.permute.xlu0 %697
        %699 = vrot.lane.b32.xlu0 %v478, 127
        %v700 = vpop.permute.xlu0 %699
        %701 = vrot.lane.b32.xlu0 %v479, 127
        %v702 = vpop.permute.xlu0 %701
        %703 = vrot.lane.b32.xlu0 %v480, 127
        %v704 = vpop.permute.xlu0 %703
        %705 = vrot.lane.b32.xlu0 %v481, 127
        %v706 = vpop.permute.xlu0 %705
        %707 = vrot.lane.b32.xlu0 %v482, 127
        %v708 = vpop.permute.xlu0 %707
        %v709 = vsel %vm532, 0.0, %v678
        %v710 = vsel %vm532, 0.0, %v680
        %v711 = vsel %vm532, 0.0, %v682
        %v712 = vsel %vm532, 0.0, %v684
        %v713 = vsel %vm532, 0.0, %v686
        %v714 = vsel %vm532, 0.0, %v688
        %v715 = vsel %vm532, 0.0, %v690
        %v716 = vsel %vm532, 0.0, %v692
        %v717 = vsel %vm532, 0.0, %v694
        %v718 = vsel %vm532, 0.0, %v696
        %v719 = vsel %vm532, 0.0, %v698
        %v720 = vsel %vm532, 0.0, %v700
        %v721 = vsel %vm532, 0.0, %v702
        %v722 = vsel %vm532, 0.0, %v704
        %v723 = vsel %vm532, 0.0, %v706
        %v724 = vsel %vm532, 0.0, %v708
        %v725 = vadd.f32 %v661, %v709
        %v726 = vadd.f32 %v662, %v710
        %v727 = vadd.f32 %v663, %v711
        %v728 = vadd.f32 %v664, %v712
        %v729 = vadd.f32 %v665, %v713
        %v730 = vadd.f32 %v666, %v714
        %v731 = vadd.f32 %v667, %v715
        %v732 = vadd.f32 %v668, %v716
        %v733 = vadd.f32 %v669, %v717
        %v734 = vadd.f32 %v670, %v718
        %v735 = vadd.f32 %v671, %v719
        %v736 = vadd.f32 %v672, %v720
        %v737 = vadd.f32 %v673, %v721
        %v738 = vadd.f32 %v674, %v722
        %v739 = vadd.f32 %v675, %v723
        %v740 = vadd.f32 %v676, %v724
        %v741 = vmul.f32 %v581, %v581
        %v742 = vmul.f32 %v582, %v582
        %v743 = vmul.f32 %v583, %v583
        %v744 = vmul.f32 %v584, %v584
        %v745 = vmul.f32 %v585, %v585
        %v746 = vmul.f32 %v586, %v586
        %v747 = vmul.f32 %v587, %v587
        %v748 = vmul.f32 %v588, %v588
        %v749 = vmul.f32 %v589, %v589
        %v750 = vmul.f32 %v590, %v590
        %v751 = vmul.f32 %v591, %v591
        %v752 = vmul.f32 %v592, %v592
        %v753 = vmul.f32 %v593, %v593
        %v754 = vmul.f32 %v594, %v594
        %v755 = vmul.f32 %v595, %v595
        %v756 = vmul.f32 %v596, %v596
        %v757 = vmul.f32 %v725, %v725
        %v758 = vmul.f32 %v726, %v726
        %v759 = vmul.f32 %v727, %v727
        %v760 = vmul.f32 %v728, %v728
        %v761 = vmul.f32 %v729, %v729
        %v762 = vmul.f32 %v730, %v730
        %v763 = vmul.f32 %v731, %v731
        %v764 = vmul.f32 %v732, %v732
        %v765 = vmul.f32 %v733, %v733
        %v766 = vmul.f32 %v734, %v734
        %v767 = vmul.f32 %v735, %v735
        %v768 = vmul.f32 %v736, %v736
        %v769 = vmul.f32 %v737, %v737
        %v770 = vmul.f32 %v738, %v738
        %v771 = vmul.f32 %v739, %v739
        %v772 = vmul.f32 %v740, %v740
        %v773 = vadd.f32 %v741, %v757
        %v774 = vadd.f32 %v742, %v758
        %v775 = vadd.f32 %v743, %v759
        %v776 = vadd.f32 %v744, %v760
        %v777 = vadd.f32 %v745, %v761
        %v778 = vadd.f32 %v746, %v762
        %v779 = vadd.f32 %v747, %v763
        %v780 = vadd.f32 %v748, %v764
        %v781 = vadd.f32 %v749, %v765
        %v782 = vadd.f32 %v750, %v766
        %v783 = vadd.f32 %v751, %v767
        %v784 = vadd.f32 %v752, %v768
        %v785 = vadd.f32 %v753, %v769
        %v786 = vadd.f32 %v754, %v770
        %v787 = vadd.f32 %v755, %v771
        %v788 = vadd.f32 %v756, %v772
        %v789 = vrsqrt.pop %v773
        %v790 = vmul.f32 %v773, %v789
        %vm791 = vcmp.eq.f32.partialorder %v773, inf
        %v792 = vsel %vm791, %v773, %v790
        %vm793 = vcmp.eq.f32.partialorder %v773, 0.0
        %v794 = vand.u32 %v773, 2147483648
        %v795 = vsel %vm793, %v794, %v792
        %v796 = vrsqrt.pop %v774
        %v797 = vmul.f32 %v774, %v796
        %vm798 = vcmp.eq.f32.partialorder %v774, inf
        %v799 = vsel %vm798, %v774, %v797
        %vm800 = vcmp.eq.f32.partialorder %v774, 0.0
        %v801 = vand.u32 %v774, 2147483648
        %v802 = vsel %vm800, %v801, %v799
        %v803 = vrsqrt.pop %v775
        %v804 = vmul.f32 %v775, %v803
        %vm805 = vcmp.eq.f32.partialorder %v775, inf
        %v806 = vsel %vm805, %v775, %v804
        %vm807 = vcmp.eq.f32.partialorder %v775, 0.0
        %v808 = vand.u32 %v775, 2147483648
        %v809 = vsel %vm807, %v808, %v806
        %v810 = vrsqrt.pop %v776
        %v811 = vmul.f32 %v776, %v810
        %vm812 = vcmp.eq.f32.partialorder %v776, inf
        %v813 = vsel %vm812, %v776, %v811
        %vm814 = vcmp.eq.f32.partialorder %v776, 0.0
        %v815 = vand.u32 %v776, 2147483648
        %v816 = vsel %vm814, %v815, %v813
        %v817 = vrsqrt.pop %v777
        %v818 = vmul.f32 %v777, %v817
        %vm819 = vcmp.eq.f32.partialorder %v777, inf
        %v820 = vsel %vm819, %v777, %v818
        %vm821 = vcmp.eq.f32.partialorder %v777, 0.0
        %v822 = vand.u32 %v777, 2147483648
        %v823 = vsel %vm821, %v822, %v820
        %v824 = vrsqrt.pop %v778
        %v825 = vmul.f32 %v778, %v824
        %vm826 = vcmp.eq.f32.partialorder %v778, inf
        %v827 = vsel %vm826, %v778, %v825
        %vm828 = vcmp.eq.f32.partialorder %v778, 0.0
        %v829 = vand.u32 %v778, 2147483648
        %v830 = vsel %vm828, %v829, %v827
        %v831 = vrsqrt.pop %v779
        %v832 = vmul.f32 %v779, %v831
        %vm833 = vcmp.eq.f32.partialorder %v779, inf
        %v834 = vsel %vm833, %v779, %v832
        %vm835 = vcmp.eq.f32.partialorder %v779, 0.0
        %v836 = vand.u32 %v779, 2147483648
        %v837 = vsel %vm835, %v836, %v834
        %v838 = vrsqrt.pop %v780
        %v839 = vmul.f32 %v780, %v838
        %vm840 = vcmp.eq.f32.partialorder %v780, inf
        %v841 = vsel %vm840, %v780, %v839
        %vm842 = vcmp.eq.f32.partialorder %v780, 0.0
        %v843 = vand.u32 %v780, 2147483648
        %v844 = vsel %vm842, %v843, %v841
        %v845 = vrsqrt.pop %v781
        %v846 = vmul.f32 %v781, %v845
        %vm847 = vcmp.eq.f32.partialorder %v781, inf
        %v848 = vsel %vm847, %v781, %v846
        %vm849 = vcmp.eq.f32.partialorder %v781, 0.0
        %v850 = vand.u32 %v781, 2147483648
        %v851 = vsel %vm849, %v850, %v848
        %v852 = vrsqrt.pop %v782
        %v853 = vmul.f32 %v782, %v852
        %vm854 = vcmp.eq.f32.partialorder %v782, inf
        %v855 = vsel %vm854, %v782, %v853
        %vm856 = vcmp.eq.f32.partialorder %v782, 0.0
        %v857 = vand.u32 %v782, 2147483648
        %v858 = vsel %vm856, %v857, %v855
        %v859 = vrsqrt.pop %v783
        %v860 = vmul.f32 %v783, %v859
        %vm861 = vcmp.eq.f32.partialorder %v783, inf
        %v862 = vsel %vm861, %v783, %v860
        %vm863 = vcmp.eq.f32.partialorder %v783, 0.0
        %v864 = vand.u32 %v783, 2147483648
        %v865 = vsel %vm863, %v864, %v862
        %v866 = vrsqrt.pop %v784
        %v867 = vmul.f32 %v784, %v866
        %vm868 = vcmp.eq.f32.partialorder %v784, inf
        %v869 = vsel %vm868, %v784, %v867
        %vm870 = vcmp.eq.f32.partialorder %v784, 0.0
        %v871 = vand.u32 %v784, 2147483648
        %v872 = vsel %vm870, %v871, %v869
        %v873 = vrsqrt.pop %v785
        %v874 = vmul.f32 %v785, %v873
        %vm875 = vcmp.eq.f32.partialorder %v785, inf
        %v876 = vsel %vm875, %v785, %v874
        %vm877 = vcmp.eq.f32.partialorder %v785, 0.0
        %v878 = vand.u32 %v785, 2147483648
        %v879 = vsel %vm877, %v878, %v876
        %v880 = vrsqrt.pop %v786
        %v881 = vmul.f32 %v786, %v880
        %vm882 = vcmp.eq.f32.partialorder %v786, inf
        %v883 = vsel %vm882, %v786, %v881
        %vm884 = vcmp.eq.f32.partialorder %v786, 0.0
        %v885 = vand.u32 %v786, 2147483648
        %v886 = vsel %vm884, %v885, %v883
        %v887 = vrsqrt.pop %v787
        %v888 = vmul.f32 %v787, %v887
        %vm889 = vcmp.eq.f32.partialorder %v787, inf
        %v890 = vsel %vm889, %v787, %v888
        %vm891 = vcmp.eq.f32.partialorder %v787, 0.0
        %v892 = vand.u32 %v787, 2147483648
        %v893 = vsel %vm891, %v892, %v890
        %v894 = vrsqrt.pop %v788
        %v895 = vmul.f32 %v788, %v894
        %vm896 = vcmp.eq.f32.partialorder %v788, inf
        %v897 = vsel %vm896, %v788, %v895
        %vm898 = vcmp.eq.f32.partialorder %v788, 0.0
        %v899 = vand.u32 %v788, 2147483648
        %v900 = vsel %vm898, %v899, %v897
        %v901 = vadd.f32 %v795, 0.001
        %v902 = vadd.f32 %v802, 0.001
        %v903 = vadd.f32 %v809, 0.001
        %v904 = vadd.f32 %v816, 0.001
        %v905 = vadd.f32 %v823, 0.001
        %v906 = vadd.f32 %v830, 0.001
        %v907 = vadd.f32 %v837, 0.001
        %v908 = vadd.f32 %v844, 0.001
        %v909 = vadd.f32 %v851, 0.001
        %v910 = vadd.f32 %v858, 0.001
        %v911 = vadd.f32 %v865, 0.001
        %v912 = vadd.f32 %v872, 0.001
        %v913 = vadd.f32 %v879, 0.001
        %v914 = vadd.f32 %v886, 0.001
        %v915 = vadd.f32 %v893, 0.001
        %v916 = vadd.f32 %v900, 0.001
        %v917 = vrcp.pop %v901
        %v918 = vrcp.pop %v902
        %v919 = vrcp.pop %v903
        %v920 = vrcp.pop %v904
        %v921 = vrcp.pop %v905
        %v922 = vrcp.pop %v906
        %v923 = vrcp.pop %v907
        %v924 = vrcp.pop %v908
        %v925 = vrcp.pop %v909
        %v926 = vrcp.pop %v910
        %v927 = vrcp.pop %v911
        %v928 = vrcp.pop %v912
        %v929 = vrcp.pop %v913
        %v930 = vrcp.pop %v914
        %v931 = vrcp.pop %v915
        %v932 = vrcp.pop %v916
        %v933 = vmul.f32 %v581, %v917
        %v934 = vmul.f32 %v582, %v918
        %v935 = vmul.f32 %v583, %v919
        %v936 = vmul.f32 %v584, %v920
        %v937 = vmul.f32 %v585, %v921
        %v938 = vmul.f32 %v586, %v922
        %v939 = vmul.f32 %v587, %v923
        %v940 = vmul.f32 %v588, %v924
        %v941 = vmul.f32 %v589, %v925
        %v942 = vmul.f32 %v590, %v926
        %v943 = vmul.f32 %v591, %v927
        %v944 = vmul.f32 %v592, %v928
        %v945 = vmul.f32 %v593, %v929
        %v946 = vmul.f32 %v594, %v930
        %v947 = vmul.f32 %v595, %v931
        %v948 = vmul.f32 %v596, %v932
        %949 = vst [vmem:[%s217] sm:$0xff] %v933
        %950 = vst [vmem:[%s217 + $0x8] sm:$0xff] %v934
        %951 = vst [vmem:[%s217 + $0x10] sm:$0xff] %v935
        %952 = vst [vmem:[%s217 + $0x18] sm:$0xff] %v936
        %953 = vst [vmem:[%s217 + $0x20] sm:$0xff] %v937
        %954 = vst [vmem:[%s217 + $0x28] sm:$0xff] %v938
        %955 = vst [vmem:[%s217 + $0x30] sm:$0xff] %v939
        %956 = vst [vmem:[%s217 + $0x38] sm:$0xff] %v940
        %957 = vst [vmem:[%s217 + $0x40] sm:$0xff] %v941
        %958 = vst [vmem:[%s217 + $0x48] sm:$0xff] %v942
        %959 = vst [vmem:[%s217 + $0x50] sm:$0xff] %v943
        %960 = vst [vmem:[%s217 + $0x58] sm:$0xff] %v944
        %961 = vst [vmem:[%s217 + $0x60] sm:$0xff] %v945
        %962 = vst [vmem:[%s217 + $0x68] sm:$0xff] %v946
        %963 = vst [vmem:[%s217 + $0x70] sm:$0xff] %v947
        %964 = vst [vmem:[%s217 + $0x78] sm:$0xff] %v948
        %v965 = vmul.f32 %v725, %v917
        %v966 = vmul.f32 %v726, %v918
        %v967 = vmul.f32 %v727, %v919
        %v968 = vmul.f32 %v728, %v920
        %v969 = vmul.f32 %v729, %v921
        %v970 = vmul.f32 %v730, %v922
        %v971 = vmul.f32 %v731, %v923
        %v972 = vmul.f32 %v732, %v924
        %v973 = vmul.f32 %v733, %v925
        %v974 = vmul.f32 %v734, %v926
        %v975 = vmul.f32 %v735, %v927
        %v976 = vmul.f32 %v736, %v928
        %v977 = vmul.f32 %v737, %v929
        %v978 = vmul.f32 %v738, %v930
        %v979 = vmul.f32 %v739, %v931
        %v980 = vmul.f32 %v740, %v932
        %s981 = scalar_lea.vmem %s217, 128 [#allocation2]
        %982 = vst [vmem:[%s981] sm:$0xff] %v965
        %983 = vst [vmem:[%s981 + $0x8] sm:$0xff] %v966
        %984 = vst [vmem:[%s981 + $0x10] sm:$0xff] %v967
        %985 = vst [vmem:[%s981 + $0x18] sm:$0xff] %v968
        %986 = vst [vmem:[%s981 + $0x20] sm:$0xff] %v969
        %987 = vst [vmem:[%s981 + $0x28] sm:$0xff] %v970
        %988 = vst [vmem:[%s981 + $0x30] sm:$0xff] %v971
        %989 = vst [vmem:[%s981 + $0x38] sm:$0xff] %v972
        %990 = vst [vmem:[%s981 + $0x40] sm:$0xff] %v973
        %991 = vst [vmem:[%s981 + $0x48] sm:$0xff] %v974
        %992 = vst [vmem:[%s981 + $0x50] sm:$0xff] %v975
        %993 = vst [vmem:[%s981 + $0x58] sm:$0xff] %v976
        %994 = vst [vmem:[%s981 + $0x60] sm:$0xff] %v977
        %995 = vst [vmem:[%s981 + $0x68] sm:$0xff] %v978
        %996 = vst [vmem:[%s981 + $0x70] sm:$0xff] %v979
        %997 = vst [vmem:[%s981 + $0x78] sm:$0xff] %v980
        %vm998 = vcmp.gt.f32.partialorder %v795, 0.0001
        %vm999 = vcmp.gt.f32.partialorder %v802, 0.0001
        %vm1000 = vcmp.gt.f32.partialorder %v809, 0.0001
        %vm1001 = vcmp.gt.f32.partialorder %v816, 0.0001
        %vm1002 = vcmp.gt.f32.partialorder %v823, 0.0001
        %vm1003 = vcmp.gt.f32.partialorder %v830, 0.0001
        %vm1004 = vcmp.gt.f32.partialorder %v837, 0.0001
        %vm1005 = vcmp.gt.f32.partialorder %v844, 0.0001
        %vm1006 = vcmp.gt.f32.partialorder %v851, 0.0001
        %vm1007 = vcmp.gt.f32.partialorder %v858, 0.0001
        %vm1008 = vcmp.gt.f32.partialorder %v865, 0.0001
        %vm1009 = vcmp.gt.f32.partialorder %v872, 0.0001
        %vm1010 = vcmp.gt.f32.partialorder %v879, 0.0001
        %vm1011 = vcmp.gt.f32.partialorder %v886, 0.0001
        %vm1012 = vcmp.gt.f32.partialorder %v893, 0.0001
        %vm1013 = vcmp.gt.f32.partialorder %v900, 0.0001
        %v1014 = vsel %vm998, 1, 0
        %v1015 = vsel %vm999, 1, 0
        %v1016 = vsel %vm1000, 1, 0
        %v1017 = vsel %vm1001, 1, 0
        %v1018 = vsel %vm1002, 1, 0
        %v1019 = vsel %vm1003, 1, 0
        %v1020 = vsel %vm1004, 1, 0
        %v1021 = vsel %vm1005, 1, 0
        %v1022 = vsel %vm1006, 1, 0
        %v1023 = vsel %vm1007, 1, 0
        %v1024 = vsel %vm1008, 1, 0
        %v1025 = vsel %vm1009, 1, 0
        %v1026 = vsel %vm1010, 1, 0
        %v1027 = vsel %vm1011, 1, 0
        %v1028 = vsel %vm1012, 1, 0
        %v1029 = vsel %vm1013, 1, 0
        %1030 = vst [vmem:[%s224] sm:$0xff] %v1014
        %1031 = vst [vmem:[%s224 + $0x8] sm:$0xff] %v1015
        %1032 = vst [vmem:[%s224 + $0x10] sm:$0xff] %v1016
        %1033 = vst [vmem:[%s224 + $0x18] sm:$0xff] %v1017
        %1034 = vst [vmem:[%s224 + $0x20] sm:$0xff] %v1018
        %1035 = vst [vmem:[%s224 + $0x28] sm:$0xff] %v1019
        %1036 = vst [vmem:[%s224 + $0x30] sm:$0xff] %v1020
        %1037 = vst [vmem:[%s224 + $0x38] sm:$0xff] %v1021
        %1038 = vst [vmem:[%s224 + $0x40] sm:$0xff] %v1022
        %1039 = vst [vmem:[%s224 + $0x48] sm:$0xff] %v1023
        %1040 = vst [vmem:[%s224 + $0x50] sm:$0xff] %v1024
        %1041 = vst [vmem:[%s224 + $0x58] sm:$0xff] %v1025
        %1042 = vst [vmem:[%s224 + $0x60] sm:$0xff] %v1026
        %1043 = vst [vmem:[%s224 + $0x68] sm:$0xff] %v1027
        %1044 = vst [vmem:[%s224 + $0x70] sm:$0xff] %v1028
        %1045 = vst [vmem:[%s224 + $0x78] sm:$0xff] %v1029
        %s1046 = sand.u32 %s99, 1
        %s1047 = scalar_lea.sflag [#allocation3], %s1046
        %s1048 = sand.u32 %s99, 1
        %s1049 = smul.addr %s1048, 256
        %s1050 = scalar_lea.vmem [#allocation2], %s1049
        %s1051 = sand.u32 %s127, 1
        %s1052 = scalar_lea.sflag [#allocation5], %s1051
        %s1053 = sand.u32 %s127, 1
        %s1054 = smul.addr %s1053, 128
        %s1055 = scalar_lea.vmem [#allocation4], %s1054
        // Predicated region
        $region29: #{sobel_forward.1} parent=27 // pred_check
          %p1056 = pneg %p109
        $region30: #{sobel_forward.1} parent=27 // pred_check_branch
          %1058 = sbr.rel (%p1056) target = $region32
        $region31: #{sobel_forward.1} parent=27 // pred_region
          #allocation7 [shape = 'u32[6]{0}', space=smem, size = 0x18, scoped, tag = 'DMA stride descriptor']
          %s1059 = smul.u32 16, %s26
          %s1061 = ssub.s32 4096, 4096
          %1062 = vsyncadd %s1047, %s1061
          %s1063 = smul.addr %s25, 64
          %s1064 = sadd.s32 %s1059, %s1063
          %s1065 = smul.addr %s1064, 128
          %s1066 = scalar_lea.hbm %s2, %s1065
          %s1068 = sshll.u32 1, 14
          %s1069 = sxor.u32 4294967295, %s1068
          %s1072 = sshll.u32 7, 18
          %s1073 = sxor.u32 4294967295, %s1072
          %s1074 = sand.u32 0, %s1073
          %s1076 = sor.u32 %s1074, 0
          %s1078 = sshll.u32 3, 24
          %s1079 = sxor.u32 4294967295, %s1078
          %s1080 = sand.u32 %s1076, %s1079
          %s1082 = sor.u32 %s1080, 0
          %s1083 = sshll.u32 %s1050, 4
          %s1084 = int_to_ptr.vmem [resolvable:$true] %s1083
          %1090 = sst [smem:[#allocation7]] 2048
          %s1091 = scalar_lea.smem [#allocation7], 1
          %1092 = sst [smem:[%s1091]] 4096
          %s1093 = scalar_lea.smem [#allocation7], 2
          %1094 = sst [smem:[%s1093]] 16
          %s1095 = scalar_lea.smem [#allocation7], 3
          %1096 = sst [smem:[%s1095]] 128
          %s1097 = scalar_lea.smem [#allocation7], 4
          %1098 = sst [smem:[%s1097]] 128
          %s1099 = scalar_lea.smem [#allocation7], 5
          %1100 = sst [smem:[%s1099]] 8
          %1102 = dma.general %s1084, 4096, %s1066, %s1047, [#allocation6], [#allocation7], %s1082, 0
        $region32: #{sobel_forward.1} parent=27 // pred_fallthru
          _
        // Predicated region
        $region33: #{sobel_forward.1} parent=27 // pred_check
          %p1103 = pneg %p137
        $region34: #{sobel_forward.1} parent=27 // pred_check_branch
          %1105 = sbr.rel (%p1103) target = $region36
        $region35: #{sobel_forward.1} parent=27 // pred_region
          %s1106 = smul.u32 16, %s26
          %s1108 = ssub.s32 2048, 2048
          %1109 = vsyncadd %s1052, %s1108
          %s1110 = smul.addr %s25, 32
          %s1111 = sadd.s32 %s1106, %s1110
          %s1112 = smul.addr %s1111, 128
          %s1113 = scalar_lea.hbm %s3, %s1112
          %s1114 = sshll.u32 %s1055, 4
          %s1115 = int_to_ptr.vmem [resolvable:$true] %s1114
          %1120 = dma.vmem_to_hbm [thread:$0]  %s1115, 2048, %s1113, %s1052, 128, 128, 8
        $region36: #{sobel_forward.1} parent=27 // pred_fallthru
          _
      $region28: #{sobel_forward.1} parent=5 // pred_fallthru
        _
      %p1121 = scmp.le.s32.totalorder 2, %s16
      // Predicated region
      $region37: #{sobel_forward.1} parent=5 // pred_check
        %p1122 = pneg %p1121
      $region38: #{sobel_forward.1} parent=5 // pred_check_branch
        %1124 = sbr.rel (%p1122) target = $region40
      $region39: #{sobel_forward.1} parent=5 // pred_region
        %s1125 = ssub.s32 %s16, 2
        // Predicated region
        $region41: #{sobel_forward.1} parent=39 // pred_check
          %p1126 = pneg %p115
        $region42: #{sobel_forward.1} parent=39 // pred_check_branch
          %1128 = sbr.rel (%p1126) target = $region44
        $region43: #{sobel_forward.1} parent=39 // pred_region
          %s1129 = sand.u32 %s100, 1
          %s1130 = scalar_lea.sflag [#allocation3], %s1129
          %s1131 = sand.u32 %s100, 1
          %s1132 = smul.addr %s1131, 256
          %s1133 = scalar_lea.vmem [#allocation2], %s1132
          %1134 = dma.done %s1130, 4096
        $region44: #{sobel_forward.1} parent=39 // pred_fallthru
          _
        // Predicated region
        $region45: #{sobel_forward.1} parent=39 // pred_check
          %p1135 = pneg %p143
        $region46: #{sobel_forward.1} parent=39 // pred_check_branch
          %1137 = sbr.rel (%p1135) target = $region48
        $region47: #{sobel_forward.1} parent=39 // pred_region
          %s1138 = sand.u32 %s128, 1
          %s1139 = scalar_lea.sflag [#allocation5], %s1138
          %s1140 = sand.u32 %s128, 1
          %s1141 = smul.addr %s1140, 128
          %s1142 = scalar_lea.vmem [#allocation4], %s1141
          %1143 = dma.done %s1139, 2048
        $region48: #{sobel_forward.1} parent=39 // pred_fallthru
          _
      $region40: #{sobel_forward.1} parent=5 // pred_fallthru
        _
    $region6: #{sobel_forward.1} parent=1 // loop_footer
      %s20 = sadd.s32 1, %s16
    $region7: #{sobel_forward.1} parent=1 // loop_footer_branch
      %15 = sbr.rel target = $region3
    $region8: #{sobel_forward.1} parent=1 // loop_exit
      _
    %1144 = vsyncpa [#allocation3], 1
    %s1145 = scalar_lea.sflag [#allocation3], 1
    %1146 = vsyncpa %s1145, 1
    %1147 = vsyncpa [#allocation5], 1
    %s1148 = scalar_lea.sflag [#allocation5], 1
    %1149 = vsyncpa %s1148, 1

</llo_original>
